<compile_context>
chip_gen: v7x
topology: tpu7x:2x2x1
jax: 0.10.0
libtpu: 0.0.40
codegen_flags: <defaults>
</compile_context>

<pallas_src>
import functools

import jax
import jax.numpy as jnp
from jax import lax
from jax.experimental import pallas as pl
from jax.experimental.pallas import tpu as pltpu


# ---------------------------------------------------------------------------
# Shared per-tile math
# ---------------------------------------------------------------------------
def _bn_dropout_tile(x, gamma, beta, bits, *, eps, keep_threshold):
    """BatchNorm (training-mode batch stats) + inverted dropout on one tile.

    x: (B, t) f32; gamma/beta: (1, t) f32 with the 1/(1-p) scale pre-folded;
    bits: (B, t) uint32 or None.  Statistics are per-feature over the batch,
    computed in a single pass (var = E[x^2] - mean^2, biased, as in PyTorch).
    """
    inv_b = jnp.float32(1.0 / x.shape[0])
    mean = jnp.sum(x, axis=0, keepdims=True) * inv_b
    ex2 = jnp.sum(x * x, axis=0, keepdims=True) * inv_b
    var = ex2 - mean * mean
    scale = gamma * lax.rsqrt(var + jnp.float32(eps))     # rsqrt -> EUP (free slot)
    shift = beta - mean * scale
    y = x * scale + shift
    if keep_threshold is not None:
        thr = jnp.asarray(keep_threshold, dtype=jnp.uint32)
        y = jnp.where(bits >= thr, y, jnp.float32(0.0))    # integer-threshold keep
    return y


# ---------------------------------------------------------------------------
# Tiled kernel: grid = (H // tile_h, 4); grid axis 1 selects the section.
# ---------------------------------------------------------------------------
def _merger_tiled_kernel(prem_ref, hypo_ref, gamma_ref, beta_ref, *rest,
                         eps, keep_threshold):
    if keep_threshold is not None:
        bits_ref, out_ref = rest
    else:
        (out_ref,) = rest
    section = pl.program_id(1)

    def run(x):
        bits = bits_ref[...] if keep_threshold is not None else None
        out_ref[...] = _bn_dropout_tile(
            x, gamma_ref[...], beta_ref[...], bits,
            eps=eps, keep_threshold=keep_threshold).astype(out_ref.dtype)

    @pl.when(section == 0)
    def _():
        run(prem_ref[...])

    @pl.when(section == 1)
    def _():
        run(hypo_ref[...])

    @pl.when(section == 2)
    def _():
        run(prem_ref[...] - hypo_ref[...])

    @pl.when(section == 3)
    def _():
        run(prem_ref[...] * hypo_ref[...])


# ---------------------------------------------------------------------------
# Fallback kernel for H not divisible by 128: one step, whole-array blocks
# (block shape == array shape is always layout-legal; fine for small problems).
# ---------------------------------------------------------------------------
def _merger_single_kernel(prem_ref, hypo_ref, gamma_ref, beta_ref, *rest,
                          hidden, eps, keep_threshold):
    if keep_threshold is not None:
        bits_ref, out_ref = rest
    else:
        (out_ref,) = rest
    prem = prem_ref[...]
    hypo = hypo_ref[...]
    for s, x in enumerate((prem, hypo, prem - hypo, prem * hypo)):
        lo, hi = s * hidden, (s + 1) * hidden
        bits = bits_ref[:, lo:hi] if keep_threshold is not None else None
        out_ref[:, lo:hi] = _bn_dropout_tile(
            x, gamma_ref[:, lo:hi], beta_ref[:, lo:hi], bits,
            eps=eps, keep_threshold=keep_threshold).astype(out_ref.dtype)


# ---------------------------------------------------------------------------
# Wrapper
# ---------------------------------------------------------------------------
def _pick_feature_tile(batch: int, hidden: int) -> int:
    # Per grid step the pipeline double-buffers ~4 blocks of (batch, tile)
    # 32-bit words (prem, hypo, bits, out) plus tiny (1, tile) rows.
    bytes_per_col = 4 * batch * 4 * 2
    budget = 24 << 20          # conservative: fits v7x's 64 MiB VMEM as well
    for t in (512, 256, 128):
        if hidden % t == 0 and t * bytes_per_col <= budget:
            return t
    return 128


def merger_forward(prem, hypo, gamma, beta, dropout_key=None, *,
                   eps: float = 1e-5, p: float = 0.5, training: bool = True):
    prem = jnp.asarray(prem, jnp.float32)
    hypo = jnp.asarray(hypo, jnp.float32)
    batch, hidden = prem.shape
    feat = 4 * hidden
    gamma = jnp.asarray(gamma, jnp.float32).reshape(1, feat)
    beta = jnp.asarray(beta, jnp.float32).reshape(1, feat)

    apply_dropout = bool(training) and float(p) > 0.0
    keep_threshold = None
    bits = None
    if apply_dropout:
        if not (0.0 < float(p) < 1.0):
            raise ValueError("dropout p must lie in [0, 1)")
        if dropout_key is None:
            raise ValueError("dropout_key is required when training with p > 0")
        inv_keep = jnp.float32(1.0 / (1.0 - float(p)))
        gamma = gamma * inv_keep          # fold inverted-dropout scale, O(F)
        beta = beta * inv_keep
        # keep  <=>  bits >= round(p * 2^32)   (P(keep) = 1 - p)
        keep_threshold = min(int(round(float(p) * 2.0 ** 32)), 2 ** 32 - 1)
        bits = jax.random.bits(dropout_key, (batch, feat), dtype=jnp.uint32)

    if hidden % 128 == 0:
        tile = _pick_feature_tile(batch, hidden)
        nf = hidden // tile
        # Output/bits/gamma column block for (feature tile j, section s).
        sec_map = lambda j, s: (0, s * nf + j)
        in_specs = [
            pl.BlockSpec((batch, tile), lambda j, s: (0, j)),   # prem (fetched once/tile)
            pl.BlockSpec((batch, tile), lambda j, s: (0, j)),   # hypo (fetched once/tile)
            pl.BlockSpec((1, tile), sec_map),                   # gamma'
            pl.BlockSpec((1, tile), sec_map),                   # beta'
        ]
        args = [prem, hypo, gamma, beta]
        if apply_dropout:
            in_specs.append(pl.BlockSpec((batch, tile), sec_map))
            args.append(bits)
        kernel = functools.partial(_merger_tiled_kernel, eps=float(eps),
                                   keep_threshold=keep_threshold)
        return pl.pallas_call(
            kernel,
            out_shape=jax.ShapeDtypeStruct((batch, feat), jnp.float32),
            grid=(nf, 4),
            in_specs=in_specs,
            out_specs=pl.BlockSpec((batch, tile), sec_map),
            compiler_params=pltpu.CompilerParams(
                dimension_semantics=("parallel", "parallel")),
        )(*args)

    # Small / irregular H (e.g. the demo H=32): single step, full arrays.
    in_specs = [
        pl.BlockSpec((batch, hidden), lambda i: (0, 0)),
        pl.BlockSpec((batch, hidden), lambda i: (0, 0)),
        pl.BlockSpec((1, feat), lambda i: (0, 0)),
        pl.BlockSpec((1, feat), lambda i: (0, 0)),
    ]
    args = [prem, hypo, gamma, beta]
    if apply_dropout:
        in_specs.append(pl.BlockSpec((batch, feat), lambda i: (0, 0)))
        args.append(bits)
    kernel = functools.partial(_merger_single_kernel, hidden=hidden,
                               eps=float(eps), keep_threshold=keep_threshold)
    return pl.pallas_call(
        kernel,
        out_shape=jax.ShapeDtypeStruct((batch, feat), jnp.float32),
        grid=(1,),
        in_specs=in_specs,
        out_specs=pl.BlockSpec((batch, feat), lambda i: (0, 0)),
        compiler_params=pltpu.CompilerParams(
            dimension_semantics=("arbitrary",)),
    )(*args)


# ---------------------------------------------------------------------------
# Demo + correctness check
# ---------------------------------------------------------------------------
def _reference(prem, hypo, gamma, beta, bits, *, eps, p):
    x = jnp.concatenate([prem, hypo, prem - hypo, prem * hypo], axis=1)
    mean = jnp.mean(x, axis=0, keepdims=True)
    var = jnp.mean((x - mean) ** 2, axis=0, keepdims=True)
    y = (x - mean) / jnp.sqrt(var + eps) * gamma.reshape(1, -1) + beta.reshape(1, -1)
    if bits is not None:
        thr = jnp.asarray(min(int(round(p * 2.0 ** 32)), 2 ** 32 - 1), jnp.uint32)
        y = jnp.where(bits >= thr, y / (1.0 - p), 0.0)
    return y


if __name__ == "__main__":
    key = jax.random.PRNGKey(0)

    # Small demo (H=32 -> fallback path) and one lane-dense tiled case (H=128).
    for (B, H) in ((8, 32), (8, 128)):
        F = 4 * H
        k_prem, k_hypo, k_gamma, k_beta, k_drop = jax.random.split(
            jax.random.fold_in(key, H), 5)
        prem = jax.random.normal(k_prem, (B, H), dtype=jnp.float32)
        hypo = jax.random.normal(k_hypo, (B, H), dtype=jnp.float32)
        gamma = (1.0 + 0.1 * jax.random.normal(k_gamma, (F,))).astype(jnp.float32)
        beta = (0.1 * jax.random.normal(k_beta, (F,))).astype(jnp.float32)

        out = merger_forward(prem, hypo, gamma, beta, k_drop,
                             eps=1e-5, p=0.5, training=True)
        out = jax.block_until_ready(out)
        assert out.shape == (B, F) and out.dtype == jnp.float32

        # Same bits the wrapper generated -> deterministic reference check.
        bits = jax.random.bits(k_drop, (B, F), dtype=jnp.uint32)
        ref = _reference(prem, hypo, gamma, beta, bits, eps=1e-5, p=0.5)
        max_err = float(jnp.max(jnp.abs(out - ref)))
        assert max_err < 2e-3, f"mismatch for H={H}: max_err={max_err}"

    print("KERNEL_OK")
</pallas_src>

<mosaic_0001>
module attributes {stable_mosaic.version = 11 : i64} {
  func.func @_merger_single_kernel(%arg0: i32, %arg1: memref<8x32xf32, #tpu.memory_space<vmem>>, %arg2: memref<8x32xf32, #tpu.memory_space<vmem>>, %arg3: memref<1x128xf32, #tpu.memory_space<vmem>>, %arg4: memref<1x128xf32, #tpu.memory_space<vmem>>, %arg5: memref<8x128xi32, #tpu.memory_space<vmem>>, %arg6: memref<8x128xf32, #tpu.memory_space<vmem>>) attributes {dimension_semantics = [#tpu.dimension_semantics<arbitrary>], iteration_bounds = array<i64: 1>, scalar_prefetch = 0 : i64, scratch_operands = 0 : i64, tpu.core_type = #tpu.core_type<tc>, window_params = [{pipeline_mode = #tpu.pipeline_mode<synchronous>, transform_indices = @transform_0, window_bounds = array<i64: 8, 32>}, {pipeline_mode = #tpu.pipeline_mode<synchronous>, transform_indices = @transform_1, window_bounds = array<i64: 8, 32>}, {pipeline_mode = #tpu.pipeline_mode<synchronous>, transform_indices = @transform_2, window_bounds = array<i64: 1, 128>}, {pipeline_mode = #tpu.pipeline_mode<synchronous>, transform_indices = @transform_3, window_bounds = array<i64: 1, 128>}, {pipeline_mode = #tpu.pipeline_mode<synchronous>, transform_indices = @transform_4, window_bounds = array<i64: 8, 128>}, {pipeline_mode = #tpu.pipeline_mode<synchronous>, transform_indices = @transform_5, window_bounds = array<i64: 8, 128>}]} {
    %c0 = arith.constant 0 : index
    %c0_0 = arith.constant 0 : index
    %0 = vector.load %arg1[%c0, %c0_0] : memref<8x32xf32, #tpu.memory_space<vmem>>, vector<8x32xf32>
    %c0_1 = arith.constant 0 : index
    %c0_2 = arith.constant 0 : index
    %1 = vector.load %arg2[%c0_1, %c0_2] : memref<8x32xf32, #tpu.memory_space<vmem>>, vector<8x32xf32>
    %2 = arith.subf %0, %1 : vector<8x32xf32>
    %3 = arith.mulf %0, %1 : vector<8x32xf32>
    %c0_3 = arith.constant 0 : index
    %c0_4 = arith.constant 0 : index
    %4 = vector.load %arg5[%c0_3, %c0_4] : memref<8x128xi32, #tpu.memory_space<vmem>>, vector<8x32xi32>
    %c0_5 = arith.constant 0 : index
    %c0_6 = arith.constant 0 : index
    %5 = vector.load %arg3[%c0_5, %c0_6] : memref<1x128xf32, #tpu.memory_space<vmem>>, vector<1x32xf32>
    %c0_7 = arith.constant 0 : index
    %c0_8 = arith.constant 0 : index
    %6 = vector.load %arg4[%c0_7, %c0_8] : memref<1x128xf32, #tpu.memory_space<vmem>>, vector<1x32xf32>
    %cst = arith.constant dense<0.000000e+00> : vector<32xf32>
    %7 = vector.multi_reduction <add>, %0, %cst [0] : vector<8x32xf32> to vector<32xf32>
    %8 = vector.shape_cast %7 : vector<32xf32> to vector<1x32xf32>
    %cst_9 = arith.constant 1.250000e-01 : f32
    %9 = vector.broadcast %cst_9 : f32 to vector<1x32xf32>
    %10 = arith.mulf %8, %9 : vector<1x32xf32>
    %11 = arith.mulf %0, %0 : vector<8x32xf32>
    %cst_10 = arith.constant dense<0.000000e+00> : vector<32xf32>
    %12 = vector.multi_reduction <add>, %11, %cst_10 [0] : vector<8x32xf32> to vector<32xf32>
    %13 = vector.shape_cast %12 : vector<32xf32> to vector<1x32xf32>
    %cst_11 = arith.constant 1.250000e-01 : f32
    %14 = vector.broadcast %cst_11 : f32 to vector<1x32xf32>
    %15 = arith.mulf %13, %14 : vector<1x32xf32>
    %16 = arith.mulf %10, %10 : vector<1x32xf32>
    %17 = arith.subf %15, %16 : vector<1x32xf32>
    %cst_12 = arith.constant 9.99999974E-6 : f32
    %18 = vector.broadcast %cst_12 : f32 to vector<1x32xf32>
    %19 = arith.addf %17, %18 : vector<1x32xf32>
    %20 = math.rsqrt %19 : vector<1x32xf32>
    %21 = arith.mulf %5, %20 : vector<1x32xf32>
    %22 = arith.mulf %10, %21 : vector<1x32xf32>
    %23 = arith.subf %6, %22 : vector<1x32xf32>
    %24 = vector.broadcast %21 : vector<1x32xf32> to vector<8x32xf32>
    %25 = arith.mulf %0, %24 : vector<8x32xf32>
    %26 = vector.broadcast %23 : vector<1x32xf32> to vector<8x32xf32>
    %27 = arith.addf %25, %26 : vector<8x32xf32>
    %c-2147483648_i32 = arith.constant -2147483648 : i32
    %28 = vector.broadcast %c-2147483648_i32 : i32 to vector<8x32xi32>
    %29 = arith.cmpi uge, %4, %28 : vector<8x32xi32>
    %cst_13 = arith.constant 0.000000e+00 : f32
    %30 = vector.broadcast %cst_13 : f32 to vector<8x32xf32>
    %31 = arith.select %29, %27, %30 : vector<8x32xi1>, vector<8x32xf32>
    %c0_14 = arith.constant 0 : index
    %c0_15 = arith.constant 0 : index
    %32 = vector.load %arg6[%c0_14, %c0_15] : memref<8x128xf32, #tpu.memory_space<vmem>>, vector<8x32xf32>
    tpu.vector_store %arg6[%c0_14, %c0_15], %31 {strides = array<i32>} : memref<8x128xf32, #tpu.memory_space<vmem>>, vector<8x32xf32>,
    %c0_16 = arith.constant 0 : index
    %c32 = arith.constant 32 : index
    %33 = vector.load %arg5[%c0_16, %c32] : memref<8x128xi32, #tpu.memory_space<vmem>>, vector<8x32xi32>
    %c0_17 = arith.constant 0 : index
    %c32_18 = arith.constant 32 : index
    %34 = vector.load %arg3[%c0_17, %c32_18] : memref<1x128xf32, #tpu.memory_space<vmem>>, vector<1x32xf32>
    %c0_19 = arith.constant 0 : index
    %c32_20 = arith.constant 32 : index
    %35 = vector.load %arg4[%c0_19, %c32_20] : memref<1x128xf32, #tpu.memory_space<vmem>>, vector<1x32xf32>
    %cst_21 = arith.constant dense<0.000000e+00> : vector<32xf32>
    %36 = vector.multi_reduction <add>, %1, %cst_21 [0] : vector<8x32xf32> to vector<32xf32>
    %37 = vector.shape_cast %36 : vector<32xf32> to vector<1x32xf32>
    %cst_22 = arith.constant 1.250000e-01 : f32
    %38 = vector.broadcast %cst_22 : f32 to vector<1x32xf32>
    %39 = arith.mulf %37, %38 : vector<1x32xf32>
    %40 = arith.mulf %1, %1 : vector<8x32xf32>
    %cst_23 = arith.constant dense<0.000000e+00> : vector<32xf32>
    %41 = vector.multi_reduction <add>, %40, %cst_23 [0] : vector<8x32xf32> to vector<32xf32>
    %42 = vector.shape_cast %41 : vector<32xf32> to vector<1x32xf32>
    %cst_24 = arith.constant 1.250000e-01 : f32
    %43 = vector.broadcast %cst_24 : f32 to vector<1x32xf32>
    %44 = arith.mulf %42, %43 : vector<1x32xf32>
    %45 = arith.mulf %39, %39 : vector<1x32xf32>
    %46 = arith.subf %44, %45 : vector<1x32xf32>
    %cst_25 = arith.constant 9.99999974E-6 : f32
    %47 = vector.broadcast %cst_25 : f32 to vector<1x32xf32>
    %48 = arith.addf %46, %47 : vector<1x32xf32>
    %49 = math.rsqrt %48 : vector<1x32xf32>
    %50 = arith.mulf %34, %49 : vector<1x32xf32>
    %51 = arith.mulf %39, %50 : vector<1x32xf32>
    %52 = arith.subf %35, %51 : vector<1x32xf32>
    %53 = vector.broadcast %50 : vector<1x32xf32> to vector<8x32xf32>
    %54 = arith.mulf %1, %53 : vector<8x32xf32>
    %55 = vector.broadcast %52 : vector<1x32xf32> to vector<8x32xf32>
    %56 = arith.addf %54, %55 : vector<8x32xf32>
    %c-2147483648_i32_26 = arith.constant -2147483648 : i32
    %57 = vector.broadcast %c-2147483648_i32_26 : i32 to vector<8x32xi32>
    %58 = arith.cmpi uge, %33, %57 : vector<8x32xi32>
    %cst_27 = arith.constant 0.000000e+00 : f32
    %59 = vector.broadcast %cst_27 : f32 to vector<8x32xf32>
    %60 = arith.select %58, %56, %59 : vector<8x32xi1>, vector<8x32xf32>
    %c0_28 = arith.constant 0 : index
    %c32_29 = arith.constant 32 : index
    %61 = vector.load %arg6[%c0_28, %c32_29] : memref<8x128xf32, #tpu.memory_space<vmem>>, vector<8x32xf32>
    tpu.vector_store %arg6[%c0_28, %c32_29], %60 {strides = array<i32>} : memref<8x128xf32, #tpu.memory_space<vmem>>, vector<8x32xf32>,
    %c0_30 = arith.constant 0 : index
    %c64 = arith.constant 64 : index
    %62 = vector.load %arg5[%c0_30, %c64] : memref<8x128xi32, #tpu.memory_space<vmem>>, vector<8x32xi32>
    %c0_31 = arith.constant 0 : index
    %c64_32 = arith.constant 64 : index
    %63 = vector.load %arg3[%c0_31, %c64_32] : memref<1x128xf32, #tpu.memory_space<vmem>>, vector<1x32xf32>
    %c0_33 = arith.constant 0 : index
    %c64_34 = arith.constant 64 : index
    %64 = vector.load %arg4[%c0_33, %c64_34] : memref<1x128xf32, #tpu.memory_space<vmem>>, vector<1x32xf32>
    %cst_35 = arith.constant dense<0.000000e+00> : vector<32xf32>
    %65 = vector.multi_reduction <add>, %2, %cst_35 [0] : vector<8x32xf32> to vector<32xf32>
    %66 = vector.shape_cast %65 : vector<32xf32> to vector<1x32xf32>
    %cst_36 = arith.constant 1.250000e-01 : f32
    %67 = vector.broadcast %cst_36 : f32 to vector<1x32xf32>
    %68 = arith.mulf %66, %67 : vector<1x32xf32>
    %69 = arith.mulf %2, %2 : vector<8x32xf32>
    %cst_37 = arith.constant dense<0.000000e+00> : vector<32xf32>
    %70 = vector.multi_reduction <add>, %69, %cst_37 [0] : vector<8x32xf32> to vector<32xf32>
    %71 = vector.shape_cast %70 : vector<32xf32> to vector<1x32xf32>
    %cst_38 = arith.constant 1.250000e-01 : f32
    %72 = vector.broadcast %cst_38 : f32 to vector<1x32xf32>
    %73 = arith.mulf %71, %72 : vector<1x32xf32>
    %74 = arith.mulf %68, %68 : vector<1x32xf32>
    %75 = arith.subf %73, %74 : vector<1x32xf32>
    %cst_39 = arith.constant 9.99999974E-6 : f32
    %76 = vector.broadcast %cst_39 : f32 to vector<1x32xf32>
    %77 = arith.addf %75, %76 : vector<1x32xf32>
    %78 = math.rsqrt %77 : vector<1x32xf32>
    %79 = arith.mulf %63, %78 : vector<1x32xf32>
    %80 = arith.mulf %68, %79 : vector<1x32xf32>
    %81 = arith.subf %64, %80 : vector<1x32xf32>
    %82 = vector.broadcast %79 : vector<1x32xf32> to vector<8x32xf32>
    %83 = arith.mulf %2, %82 : vector<8x32xf32>
    %84 = vector.broadcast %81 : vector<1x32xf32> to vector<8x32xf32>
    %85 = arith.addf %83, %84 : vector<8x32xf32>
    %c-2147483648_i32_40 = arith.constant -2147483648 : i32
    %86 = vector.broadcast %c-2147483648_i32_40 : i32 to vector<8x32xi32>
    %87 = arith.cmpi uge, %62, %86 : vector<8x32xi32>
    %cst_41 = arith.constant 0.000000e+00 : f32
    %88 = vector.broadcast %cst_41 : f32 to vector<8x32xf32>
    %89 = arith.select %87, %85, %88 : vector<8x32xi1>, vector<8x32xf32>
    %c0_42 = arith.constant 0 : index
    %c64_43 = arith.constant 64 : index
    %90 = vector.load %arg6[%c0_42, %c64_43] : memref<8x128xf32, #tpu.memory_space<vmem>>, vector<8x32xf32>
    tpu.vector_store %arg6[%c0_42, %c64_43], %89 {strides = array<i32>} : memref<8x128xf32, #tpu.memory_space<vmem>>, vector<8x32xf32>,
    %c0_44 = arith.constant 0 : index
    %c96 = arith.constant 96 : index
    %91 = vector.load %arg5[%c0_44, %c96] : memref<8x128xi32, #tpu.memory_space<vmem>>, vector<8x32xi32>
    %c0_45 = arith.constant 0 : index
    %c96_46 = arith.constant 96 : index
    %92 = vector.load %arg3[%c0_45, %c96_46] : memref<1x128xf32, #tpu.memory_space<vmem>>, vector<1x32xf32>
    %c0_47 = arith.constant 0 : index
    %c96_48 = arith.constant 96 : index
    %93 = vector.load %arg4[%c0_47, %c96_48] : memref<1x128xf32, #tpu.memory_space<vmem>>, vector<1x32xf32>
    %cst_49 = arith.constant dense<0.000000e+00> : vector<32xf32>
    %94 = vector.multi_reduction <add>, %3, %cst_49 [0] : vector<8x32xf32> to vector<32xf32>
    %95 = vector.shape_cast %94 : vector<32xf32> to vector<1x32xf32>
    %cst_50 = arith.constant 1.250000e-01 : f32
    %96 = vector.broadcast %cst_50 : f32 to vector<1x32xf32>
    %97 = arith.mulf %95, %96 : vector<1x32xf32>
    %98 = arith.mulf %3, %3 : vector<8x32xf32>
    %cst_51 = arith.constant dense<0.000000e+00> : vector<32xf32>
    %99 = vector.multi_reduction <add>, %98, %cst_51 [0] : vector<8x32xf32> to vector<32xf32>
    %100 = vector.shape_cast %99 : vector<32xf32> to vector<1x32xf32>
    %cst_52 = arith.constant 1.250000e-01 : f32
    %101 = vector.broadcast %cst_52 : f32 to vector<1x32xf32>
    %102 = arith.mulf %100, %101 : vector<1x32xf32>
    %103 = arith.mulf %97, %97 : vector<1x32xf32>
    %104 = arith.subf %102, %103 : vector<1x32xf32>
    %cst_53 = arith.constant 9.99999974E-6 : f32
    %105 = vector.broadcast %cst_53 : f32 to vector<1x32xf32>
    %106 = arith.addf %104, %105 : vector<1x32xf32>
    %107 = math.rsqrt %106 : vector<1x32xf32>
    %108 = arith.mulf %92, %107 : vector<1x32xf32>
    %109 = arith.mulf %97, %108 : vector<1x32xf32>
    %110 = arith.subf %93, %109 : vector<1x32xf32>
    %111 = vector.broadcast %108 : vector<1x32xf32> to vector<8x32xf32>
    %112 = arith.mulf %3, %111 : vector<8x32xf32>
    %113 = vector.broadcast %110 : vector<1x32xf32> to vector<8x32xf32>
    %114 = arith.addf %112, %113 : vector<8x32xf32>
    %c-2147483648_i32_54 = arith.constant -2147483648 : i32
    %115 = vector.broadcast %c-2147483648_i32_54 : i32 to vector<8x32xi32>
    %116 = arith.cmpi uge, %91, %115 : vector<8x32xi32>
    %cst_55 = arith.constant 0.000000e+00 : f32
    %117 = vector.broadcast %cst_55 : f32 to vector<8x32xf32>
    %118 = arith.select %116, %114, %117 : vector<8x32xi1>, vector<8x32xf32>
    %c0_56 = arith.constant 0 : index
    %c96_57 = arith.constant 96 : index
    %119 = vector.load %arg6[%c0_56, %c96_57] : memref<8x128xf32, #tpu.memory_space<vmem>>, vector<8x32xf32>
    tpu.vector_store %arg6[%c0_56, %c96_57], %118 {strides = array<i32>} : memref<8x128xf32, #tpu.memory_space<vmem>>, vector<8x32xf32>,
    return
  }
  func.func @transform_0(%arg0: i32) -> (i32, i32) {
    %c0_i32 = arith.constant 0 : i32
    %c0_i32_0 = arith.constant 0 : i32
    %c0_i32_1 = arith.constant 0 : i32
    return %c0_i32, %c0_i32_0 : i32, i32
  }
  func.func @transform_1(%arg0: i32) -> (i32, i32) {
    %c0_i32 = arith.constant 0 : i32
    %c0_i32_0 = arith.constant 0 : i32
    %c0_i32_1 = arith.constant 0 : i32
    return %c0_i32, %c0_i32_0 : i32, i32
  }
  func.func @transform_2(%arg0: i32) -> (i32, i32) {
    %c0_i32 = arith.constant 0 : i32
    %c0_i32_0 = arith.constant 0 : i32
    %c0_i32_1 = arith.constant 0 : i32
    return %c0_i32, %c0_i32_0 : i32, i32
  }
  func.func @transform_3(%arg0: i32) -> (i32, i32) {
    %c0_i32 = arith.constant 0 : i32
    %c0_i32_0 = arith.constant 0 : i32
    %c0_i32_1 = arith.constant 0 : i32
    return %c0_i32, %c0_i32_0 : i32, i32
  }
  func.func @transform_4(%arg0: i32) -> (i32, i32) {
    %c0_i32 = arith.constant 0 : i32
    %c0_i32_0 = arith.constant 0 : i32
    %c0_i32_1 = arith.constant 0 : i32
    return %c0_i32, %c0_i32_0 : i32, i32
  }
  func.func @transform_5(%arg0: i32) -> (i32, i32) {
    %c0_i32 = arith.constant 0 : i32
    %c0_i32_0 = arith.constant 0 : i32
    %c0_i32_1 = arith.constant 0 : i32
    return %c0_i32, %c0_i32_0 : i32, i32
  }
}

</mosaic_0001>

<llo_original>
// kernel: tpu_custom_call.1
$region0: #{tpu_custom_call.1}
  #allocation0 [shape = 'u32[]', space=smem, size = 0x4, offset = 0x4, fixed_abs, tag = 'smem constant byte address 0x4 - core index']
  #allocation1 [shape = 'u32[144,128]{1,0:T(1,128)}', space=vmem, size = 0x12000, scoped, tag = 'internal scratch']
  %s0 = inlined_call_operand.hbm [shape: f32[8,32], index: 0, kind: input, shape index: {}]
  %s1 = inlined_call_operand.hbm [shape: f32[8,32], index: 1, kind: input, shape index: {}]
  %s2 = inlined_call_operand.vmem [shape: f32[1,128], index: 2, kind: input, shape index: {}]
  %s3 = inlined_call_operand.vmem [shape: f32[1,128], index: 3, kind: input, shape index: {}]
  %s4 = inlined_call_operand.vmem [shape: u32[8,128], index: 4, kind: input, shape index: {}]
  %s5 = inlined_call_operand.hbm [shape: f32[8,128], index: 5, kind: output, shape index: {}]
  %s6 = sld [smem:[#allocation0]]
  $region38: #{tpu_custom_call.1} parent=0
    _
  %s8 = ssub.s32 1, %s6
  %s9 = scalar_select 0, %s8, %s6
  $region1: #{tpu_custom_call.1} parent=0
    #allocation2 [shape = 'u8[4096]{0}', space=vmem, size = 0x1000, scoped, tag = 'input window, operand 0, single buffered']
    #allocation3 [shape = 's32[1]{0}', space=sflag, size = 0x4, scoped, tag = 'scoped memory for tpu_custom_call.1']
    #allocation4 [shape = 's32[1]{0}', space=sflag, size = 0x4, scoped, tag = 'scoped memory for tpu_custom_call.1']
    #allocation5 [shape = 'u8[4096]{0}', space=vmem, size = 0x1000, scoped, tag = 'input window, operand 1, single buffered']
    #allocation6 [shape = 's32[1]{0}', space=sflag, size = 0x4, scoped, tag = 'scoped memory for tpu_custom_call.1']
    #allocation7 [shape = 'u8[4096]{0}', space=vmem, size = 0x1000, scoped, tag = 'output window, operand 0, single buffered']
    %10 = vsyncpa [#allocation3], 0
    %11 = vsyncpa [#allocation6], 0
    %12 = vsyncpa [#allocation4], 0
    // Predicated region
    $region2: #{tpu_custom_call.1} parent=1 // pred_check
      _
    $region3: #{tpu_custom_call.1} parent=1 // pred_check_branch
      %14 = sbr.rel (0) target = $region5
    $region4: #{tpu_custom_call.1} parent=1 // pred_region
      %s16 = ssub.s32 128, 128
      %17 = vsyncadd [#allocation3], %s16
      %s19 = sshll.u32 [#allocation2], 4
      %s20 = int_to_ptr.vmem [resolvable:$true] %s19
      %22 = dma.hbm_to_vmem [thread:$0]  %s0, 128, %s20, [#allocation3]
    $region5: #{tpu_custom_call.1} parent=1 // pred_fallthru
      _
    // Predicated region
    $region6: #{tpu_custom_call.1} parent=1 // pred_check
      _
    $region7: #{tpu_custom_call.1} parent=1 // pred_check_branch
      %24 = sbr.rel (0) target = $region9
    $region8: #{tpu_custom_call.1} parent=1 // pred_region
      %s26 = ssub.s32 128, 128
      %27 = vsyncadd [#allocation6], %s26
      %s29 = sshll.u32 [#allocation5], 4
      %s30 = int_to_ptr.vmem [resolvable:$true] %s29
      %32 = dma.hbm_to_vmem [thread:$0]  %s1, 128, %s30, [#allocation6]
    $region9: #{tpu_custom_call.1} parent=1 // pred_fallthru
      _
    // Predicated region
    $region10: #{tpu_custom_call.1} parent=1 // pred_check
      _
    $region11: #{tpu_custom_call.1} parent=1 // pred_check_branch
      %34 = sbr.rel (0) target = $region13
    $region12: #{tpu_custom_call.1} parent=1 // pred_region
      _
    $region13: #{tpu_custom_call.1} parent=1 // pred_fallthru
      _
    // Predicated region
    $region14: #{tpu_custom_call.1} parent=1 // pred_check
      _
    $region15: #{tpu_custom_call.1} parent=1 // pred_check_branch
      %36 = sbr.rel (0) target = $region17
    $region16: #{tpu_custom_call.1} parent=1 // pred_region
      _
    $region17: #{tpu_custom_call.1} parent=1 // pred_fallthru
      _
    // Predicated region
    $region18: #{tpu_custom_call.1} parent=1 // pred_check
      _
    $region19: #{tpu_custom_call.1} parent=1 // pred_check_branch
      %38 = sbr.rel (0) target = $region21
    $region20: #{tpu_custom_call.1} parent=1 // pred_region
      _
    $region21: #{tpu_custom_call.1} parent=1 // pred_fallthru
      _
    // Predicated region
    $region22: #{tpu_custom_call.1} parent=1 // pred_check
      _
    $region23: #{tpu_custom_call.1} parent=1 // pred_check_branch
      %40 = sbr.rel (0) target = $region25
    $region24: #{tpu_custom_call.1} parent=1 // pred_region
      %41 = dma.done [#allocation3], 128
    $region25: #{tpu_custom_call.1} parent=1 // pred_fallthru
      _
    // Predicated region
    $region26: #{tpu_custom_call.1} parent=1 // pred_check
      _
    $region27: #{tpu_custom_call.1} parent=1 // pred_check_branch
      %43 = sbr.rel (0) target = $region29
    $region28: #{tpu_custom_call.1} parent=1 // pred_region
      %44 = dma.done [#allocation6], 128
    $region29: #{tpu_custom_call.1} parent=1 // pred_fallthru
      _
    %v45 = vld [vmem:[#allocation2] sm:$0xff]
    %v46 = vld [vmem:[#allocation5] sm:$0xff]
    %v47 = vsub.f32 %v45, %v46
    %v48 = vmul.f32 %v45, %v46
    %v49 = vld [vmem:[%s4] sm:$0xff]
    %v50 = vld [vmem:[%s2] sm:$0x1]
    %v51 = vld [vmem:[%s3] sm:$0x1]
    %vm52 = vcmask 261120
    %v53 = vsel %vm52, %v45, 0.0
    %v54 = vrot.slane %v53, 4
    %v55 = vadd.f32 %v53, %v54
    %v56 = vrot.slane %v55, 2
    %v57 = vadd.f32 %v55, %v56
    %v58 = vrot.slane %v57, 1
    %v59 = vadd.f32 %v57, %v58
    %v60 = vmul.f32 %v59, 0.125
    %v61 = vmul.f32 %v45, %v45
    %v62 = vsel %vm52, %v61, 0.0
    %v63 = vrot.slane %v62, 4
    %v64 = vadd.f32 %v62, %v63
    %v65 = vrot.slane %v64, 2
    %v66 = vadd.f32 %v64, %v65
    %v67 = vrot.slane %v66, 1
    %v68 = vadd.f32 %v66, %v67
    %v69 = vmul.f32 %v68, 0.125
    %v70 = vmul.f32 %v60, %v60
    %v71 = vsub.f32 %v69, %v70
    %v72 = vadd.f32 %v71, 1e-05
    %v73 = vrsqrt.pop %v72
    %v74 = vmul.f32 %v50, %v73
    %v75 = vmul.f32 %v60, %v74
    %v76 = vsub.f32 %v51, %v75
    %v78 = vlaneseq
    %v79 = vshrl.u32 %v78, 7
    %v80 = vsub.s32 0, %v79
    %v81 = vrot.slane %v74, %v80
    %v83 = vmul.f32 %v45, %v81
    %v85 = vlaneseq
    %v86 = vshrl.u32 %v85, 7
    %v87 = vsub.s32 0, %v86
    %v88 = vrot.slane %v76, %v87
    %v90 = vadd.f32 %v83, %v88
    %vm91 = vcmp.ge.u32.totalorder %v49, 2147483648
    %v92 = vsel %vm91, %v90, 0.0
    %93 = vst.msk [vmem:[#allocation7] sm:$0xff] %vm52, %v92
    %v94 = vld [vmem:[%s4] sm:$0xff]
    %v95 = vld [vmem:[%s2] sm:$0x1]
    %v96 = vld [vmem:[%s3] sm:$0x1]
    %v97 = vsel %vm52, %v46, 0.0
    %v98 = vrot.slane %v97, 4
    %v99 = vadd.f32 %v97, %v98
    %v100 = vrot.slane %v99, 2
    %v101 = vadd.f32 %v99, %v100
    %v102 = vrot.slane %v101, 1
    %v103 = vadd.f32 %v101, %v102
    %v104 = vmul.f32 %v103, 0.125
    %v105 = vmul.f32 %v46, %v46
    %v106 = vsel %vm52, %v105, 0.0
    %v107 = vrot.slane %v106, 4
    %v108 = vadd.f32 %v106, %v107
    %v109 = vrot.slane %v108, 2
    %v110 = vadd.f32 %v108, %v109
    %v111 = vrot.slane %v110, 1
    %v112 = vadd.f32 %v110, %v111
    %v113 = vmul.f32 %v112, 0.125
    %v114 = vmul.f32 %v104, %v104
    %v115 = vsub.f32 %v113, %v114
    %v116 = vadd.f32 %v115, 1e-05
    %v117 = vrsqrt.pop %v116
    %v120 = vunpack.c.l.s4 1966171168
    %v121 = vunpack.c.0.s8 %v120
    %v122 = vlaneseq
    %v123 = vshrl.u32 %v122, 7
    %v124 = vsub.s32 %v121, %v123
    %v125 = vrot.slane %v117, %v124
    %v127 = vunpack.c.l.s4 1966171168
    %v128 = vunpack.c.0.s8 %v127
    %v129 = vlaneseq
    %v130 = vshrl.u32 %v129, 7
    %v131 = vsub.s32 %v128, %v130
    %v132 = vrot.slane %v125, %v131
    %133 = vrot.lane.b32.xlu0 %v132, 32
    %v134 = vpop.permute.xlu0 %133
    %v136 = vmul.f32 %v95, %v134
    %v138 = vlaneseq
    %v139 = vshrl.u32 %v138, 7
    %v140 = vsub.s32 0, %v139
    %v141 = vrot.slane %v136, %v140
    %142 = vrot.lane.b32.xlu0 %v141, 96
    %v143 = vpop.permute.xlu0 %142
    %v145 = vmul.f32 %v104, %v143
    %v148 = vunpack.c.l.s4 1966171168
    %v149 = vunpack.c.0.s8 %v148
    %v150 = vlaneseq
    %v151 = vshrl.u32 %v150, 7
    %v152 = vsub.s32 %v149, %v151
    %v153 = vrot.slane %v145, %v152
    %v155 = vunpack.c.l.s4 1966171168
    %v156 = vunpack.c.0.s8 %v155
    %v157 = vlaneseq
    %v158 = vshrl.u32 %v157, 7
    %v159 = vsub.s32 %v156, %v158
    %v160 = vrot.slane %v153, %v159
    %161 = vrot.lane.b32.xlu0 %v160, 32
    %v162 = vpop.permute.xlu0 %161
    %v164 = vsub.f32 %v96, %v162
    %v165 = vmul.f32 %v46, %v143
    %v167 = vlaneseq
    %v168 = vshrl.u32 %v167, 7
    %v169 = vsub.s32 0, %v168
    %v170 = vrot.slane %v164, %v169
    %171 = vrot.lane.b32.xlu0 %v170, 96
    %v172 = vpop.permute.xlu0 %171
    %v174 = vadd.f32 %v165, %v172
    %vm175 = vcmp.ge.u32.totalorder %v94, 2147483648
    %177 = vrot.lane.b32.xlu0 %v174, 32
    %v178 = vpop.permute.xlu0 %177
    %v180 = vsel %vm175, %v178, 0.0
    %vm181 = vcmask 523520
    %182 = vst.msk [vmem:[#allocation7] sm:$0xff] %vm181, %v180
    %v183 = vld [vmem:[%s4] sm:$0xff]
    %v184 = vld [vmem:[%s2] sm:$0x1]
    %v185 = vld [vmem:[%s3] sm:$0x1]
    %v186 = vsel %vm52, %v47, 0.0
    %v187 = vrot.slane %v186, 4
    %v188 = vadd.f32 %v186, %v187
    %v189 = vrot.slane %v188, 2
    %v190 = vadd.f32 %v188, %v189
    %v191 = vrot.slane %v190, 1
    %v192 = vadd.f32 %v190, %v191
    %v193 = vmul.f32 %v192, 0.125
    %v194 = vmul.f32 %v47, %v47
    %v195 = vsel %vm52, %v194, 0.0
    %v196 = vrot.slane %v195, 4
    %v197 = vadd.f32 %v195, %v196
    %v198 = vrot.slane %v197, 2
    %v199 = vadd.f32 %v197, %v198
    %v200 = vrot.slane %v199, 1
    %v201 = vadd.f32 %v199, %v200
    %v202 = vmul.f32 %v201, 0.125
    %v203 = vmul.f32 %v193, %v193
    %v204 = vsub.f32 %v202, %v203
    %v205 = vadd.f32 %v204, 1e-05
    %v206 = vrsqrt.pop %v205
    %v209 = vunpack.c.l.s4 1966171168
    %v210 = vunpack.c.0.s8 %v209
    %v211 = vlaneseq
    %v212 = vshrl.u32 %v211, 7
    %v213 = vsub.s32 %v210, %v212
    %v214 = vrot.slane %v206, %v213
    %v216 = vunpack.c.l.s4 1966171168
    %v217 = vunpack.c.0.s8 %v216
    %v218 = vlaneseq
    %v219 = vshrl.u32 %v218, 7
    %v220 = vsub.s32 %v217, %v219
    %v221 = vrot.slane %v214, %v220
    %222 = vrot.lane.b32.xlu0 %v221, 64
    %v223 = vpop.permute.xlu0 %222
    %v225 = vmul.f32 %v184, %v223
    %v227 = vlaneseq
    %v228 = vshrl.u32 %v227, 7
    %v229 = vsub.s32 0, %v228
    %v230 = vrot.slane %v225, %v229
    %231 = vrot.lane.b32.xlu0 %v230, 64
    %v232 = vpop.permute.xlu0 %231
    %v234 = vmul.f32 %v193, %v232
    %v237 = vunpack.c.l.s4 1966171168
    %v238 = vunpack.c.0.s8 %v237
    %v239 = vlaneseq
    %v240 = vshrl.u32 %v239, 7
    %v241 = vsub.s32 %v238, %v240
    %v242 = vrot.slane %v234, %v241
    %v244 = vunpack.c.l.s4 1966171168
    %v245 = vunpack.c.0.s8 %v244
    %v246 = vlaneseq
    %v247 = vshrl.u32 %v246, 7
    %v248 = vsub.s32 %v245, %v247
    %v249 = vrot.slane %v242, %v248
    %250 = vrot.lane.b32.xlu0 %v249, 64
    %v251 = vpop.permute.xlu0 %250
    %v253 = vsub.f32 %v185, %v251
    %v254 = vmul.f32 %v47, %v232
    %v256 = vlaneseq
    %v257 = vshrl.u32 %v256, 7
    %v258 = vsub.s32 0, %v257
    %v259 = vrot.slane %v253, %v258
    %260 = vrot.lane.b32.xlu0 %v259, 64
    %v261 = vpop.permute.xlu0 %260
    %v263 = vadd.f32 %v254, %v261
    %vm264 = vcmp.ge.u32.totalorder %v183, 2147483648
    %266 = vrot.lane.b32.xlu0 %v263, 64
    %v267 = vpop.permute.xlu0 %266
    %v269 = vsel %vm264, %v267, 0.0
    %vm270 = vcmask 785920
    %271 = vst.msk [vmem:[#allocation7] sm:$0xff] %vm270, %v269
    %v272 = vld [vmem:[%s4] sm:$0xff]
    %v273 = vld [vmem:[%s2] sm:$0x1]
    %v274 = vld [vmem:[%s3] sm:$0x1]
    %v275 = vsel %vm52, %v48, 0.0
    %v276 = vrot.slane %v275, 4
    %v277 = vadd.f32 %v275, %v276
    %v278 = vrot.slane %v277, 2
    %v279 = vadd.f32 %v277, %v278
    %v280 = vrot.slane %v279, 1
    %v281 = vadd.f32 %v279, %v280
    %v282 = vmul.f32 %v281, 0.125
    %v283 = vmul.f32 %v48, %v48
    %v284 = vsel %vm52, %v283, 0.0
    %v285 = vrot.slane %v284, 4
    %v286 = vadd.f32 %v284, %v285
    %v287 = vrot.slane %v286, 2
    %v288 = vadd.f32 %v286, %v287
    %v289 = vrot.slane %v288, 1
    %v290 = vadd.f32 %v288, %v289
    %v291 = vmul.f32 %v290, 0.125
    %v292 = vmul.f32 %v282, %v282
    %v293 = vsub.f32 %v291, %v292
    %v294 = vadd.f32 %v293, 1e-05
    %v295 = vrsqrt.pop %v294
    %v298 = vunpack.c.l.s4 1966171168
    %v299 = vunpack.c.0.s8 %v298
    %v300 = vlaneseq
    %v301 = vshrl.u32 %v300, 7
    %v302 = vsub.s32 %v299, %v301
    %v303 = vrot.slane %v295, %v302
    %v305 = vunpack.c.l.s4 1966171168
    %v306 = vunpack.c.0.s8 %v305
    %v307 = vlaneseq
    %v308 = vshrl.u32 %v307, 7
    %v309 = vsub.s32 %v306, %v308
    %v310 = vrot.slane %v303, %v309
    %311 = vrot.lane.b32.xlu0 %v310, 96
    %v312 = vpop.permute.xlu0 %311
    %v314 = vmul.f32 %v273, %v312
    %v316 = vlaneseq
    %v317 = vshrl.u32 %v316, 7
    %v318 = vsub.s32 0, %v317
    %v319 = vrot.slane %v314, %v318
    %320 = vrot.lane.b32.xlu0 %v319, 32
    %v321 = vpop.permute.xlu0 %320
    %v323 = vmul.f32 %v282, %v321
    %v326 = vunpack.c.l.s4 1966171168
    %v327 = vunpack.c.0.s8 %v326
    %v328 = vlaneseq
    %v329 = vshrl.u32 %v328, 7
    %v330 = vsub.s32 %v327, %v329
    %v331 = vrot.slane %v323, %v330
    %v333 = vunpack.c.l.s4 1966171168
    %v334 = vunpack.c.0.s8 %v333
    %v335 = vlaneseq
    %v336 = vshrl.u32 %v335, 7
    %v337 = vsub.s32 %v334, %v336
    %v338 = vrot.slane %v331, %v337
    %339 = vrot.lane.b32.xlu0 %v338, 96
    %v340 = vpop.permute.xlu0 %339
    %v342 = vsub.f32 %v274, %v340
    %v343 = vmul.f32 %v48, %v321
    %v345 = vlaneseq
    %v346 = vshrl.u32 %v345, 7
    %v347 = vsub.s32 0, %v346
    %v348 = vrot.slane %v342, %v347
    %349 = vrot.lane.b32.xlu0 %v348, 32
    %v350 = vpop.permute.xlu0 %349
    %v352 = vadd.f32 %v343, %v350
    %vm353 = vcmp.ge.u32.totalorder %v272, 2147483648
    %355 = vrot.lane.b32.xlu0 %v352, 96
    %v356 = vpop.permute.xlu0 %355
    %v358 = vsel %vm353, %v356, 0.0
    %vm359 = vcmask 1048320
    %360 = vst.msk [vmem:[#allocation7] sm:$0xff] %vm359, %v358
    // Predicated region
    $region30: #{tpu_custom_call.1} parent=1 // pred_check
      _
    $region31: #{tpu_custom_call.1} parent=1 // pred_check_branch
      %362 = sbr.rel (0) target = $region33
    $region32: #{tpu_custom_call.1} parent=1 // pred_region
      %s364 = ssub.s32 128, 128
      %365 = vsyncadd [#allocation4], %s364
      %s367 = sshll.u32 [#allocation7], 4
      %s368 = int_to_ptr.vmem [resolvable:$true] %s367
      %370 = dma.vmem_to_hbm [thread:$0]  %s368, 128, %s5, [#allocation4]
    $region33: #{tpu_custom_call.1} parent=1 // pred_fallthru
      _
    // Predicated region
    $region34: #{tpu_custom_call.1} parent=1 // pred_check
      _
    $region35: #{tpu_custom_call.1} parent=1 // pred_check_branch
      %372 = sbr.rel (0) target = $region37
    $region36: #{tpu_custom_call.1} parent=1 // pred_region
      %373 = dma.done [#allocation4], 128
    $region37: #{tpu_custom_call.1} parent=1 // pred_fallthru
      _
    %374 = vsyncpa [#allocation3], 1
    %375 = vsyncpa [#allocation6], 1
    %376 = vsyncpa [#allocation4], 1

</llo_original>
